<compile_context>
chip_gen: v7x
topology: tpu7x:2x2x1
jax: 0.10.0
libtpu: 0.0.40
codegen_flags: <defaults>
</compile_context>

<pallas_src>
import functools

import jax
import jax.numpy as jnp
from jax.experimental import pallas as pl
from jax.experimental.pallas import tpu as pltpu


def _fused_kernel(x_ref, y_ref,
                  wa1_ref, ba1_ref, wo1_ref, bo1_ref,
                  wa2_ref, ba2_ref, wa3_ref, ba3_ref,
                  w23_ref, b23_ref,
                  yp_ref, sc_ref):
    # Shared difference input for both heads.
    d = (y_ref[...] - x_ref[...]).astype(jnp.bfloat16)                 # (TB, 64)

    # ---- Action head: 64 -> 256 -> 128 -> 64 -------------------------------
    h1 = jnp.dot(d, wa1_ref[...], preferred_element_type=jnp.float32) + ba1_ref[...]
    h1 = jnp.maximum(h1, 0.0).astype(jnp.bfloat16)                      # (TB, 256)
    # TODO(synk): nn.Dropout(0.5) has no deterministic eval equivalent; identity.
    h2 = jnp.dot(h1, wa2_ref[...], preferred_element_type=jnp.float32) + ba2_ref[...]
    h2 = jnp.maximum(h2, 0.0).astype(jnp.bfloat16)                      # (TB, 128)
    yp_ref[...] = (jnp.dot(h2, wa3_ref[...], preferred_element_type=jnp.float32)
                   + ba3_ref[...])                                      # (TB, 64) f32

    # ---- Object head: 64 -> 32(pad 128) -> (folded 32->16->1) -> sigmoid ----
    g1 = jnp.dot(d, wo1_ref[...], preferred_element_type=jnp.float32) + bo1_ref[...]
    g1 = jnp.maximum(g1, 0.0)                                           # (TB, 128), lanes 32..127 == 0
    # Folded wo2@wo3 stored as a (1,128) f32 row (zeros past lane 31):
    # logit = sum_k g1[:,k] * w23[k]  (lane reduction, no N=1 matmul).
    logit = jnp.sum(g1 * w23_ref[...], axis=-1, keepdims=True) + b23_ref[...]
    sc_ref[...] = jax.nn.sigmoid(logit)                                 # (TB, 1) f32


def pack_params(params):
    """Fold/pack the 12 raw (in,out)-layout params into 10 kernel params.
    Call ONCE (outside the per-forward path) and reuse the result."""
    (wa1, ba1, wa2, ba2, wa3, ba3, wo1, bo1, wo2, bo2, wo3, bo3) = params

    # Object first layer zero-padded from 32 -> 128 lanes.
    wo1p = jnp.zeros((64, 128), jnp.float32).at[:, :32].set(wo1)
    bo1p = jnp.zeros((1, 128), jnp.float32).at[:, :32].set(bo1)

    # Object layers 2+3 folded (no nonlinearity in between), stored as a row.
    w23 = wo2 @ wo3                                                     # (32, 1)
    b23 = bo2 @ wo3 + bo3                                               # (1, 1)
    w23p = jnp.zeros((1, 128), jnp.float32).at[0, :32].set(w23[:, 0])

    return (wa1.astype(jnp.bfloat16), ba1,
            wo1p.astype(jnp.bfloat16), bo1p,
            wa2.astype(jnp.bfloat16), ba2,
            wa3.astype(jnp.bfloat16), ba3,
            w23p, b23)


@functools.partial(jax.jit, static_argnames=("tb",))
def net_forward(x, y, packed, tb=4096):
    """x, y: (B, 64) f32.  packed = pack_params(raw_params).
    Returns (y_pred (B,64) f32, object_score (B,1) f32)."""
    B, F = x.shape
    assert F == 64
    (wa1, ba1, wo1p, bo1p, wa2, ba2, wa3, ba3, w23p, b23) = packed

    # Batch tile: multiple of 8, capped at `tb`; ensure >= 2 grid steps when
    # B allows so v7x's two TensorCores both get work.  No input padding:
    # the last block may be ragged (OOB output writes are masked).
    half = ((pl.cdiv(B, 2) + 7) // 8) * 8
    tile_b = max(8, min(tb, half))
    grid = (pl.cdiv(B, tile_b),)

    act_spec = pl.BlockSpec((tile_b, 64), lambda i: (i, 0))
    res = lambda shape: pl.BlockSpec(shape, lambda i: (0, 0))           # VMEM-resident

    y_pred, score = pl.pallas_call(
        _fused_kernel,
        out_shape=(jax.ShapeDtypeStruct((B, 64), jnp.float32),
                   jax.ShapeDtypeStruct((B, 1), jnp.float32)),
        grid=grid,
        in_specs=[act_spec, act_spec,
                  res((64, 256)), res((1, 256)),
                  res((64, 128)), res((1, 128)),
                  res((256, 128)), res((1, 128)),
                  res((128, 64)), res((1, 64)),
                  res((1, 128)), res((1, 1))],
        out_specs=(pl.BlockSpec((tile_b, 64), lambda i: (i, 0)),
                   pl.BlockSpec((tile_b, 1), lambda i: (i, 0))),
        compiler_params=pltpu.CompilerParams(
            dimension_semantics=("parallel",),
            vmem_limit_bytes=48 * 1024 * 1024),
    )(x, y, wa1, ba1, wo1p, bo1p, wa2, ba2, wa3, ba3, w23p, b23)

    return y_pred, score


def init_params(key):
    """Deterministic synthetic params.  PyTorch Linear weight is (out, in);
    build that shape then transpose to (in, out) for the kernel."""
    def linear(k, fan_in, fan_out):
        k1, k2 = jax.random.split(k)
        bound = 1.0 / jnp.sqrt(fan_in)
        w = jax.random.uniform(k1, (fan_out, fan_in), jnp.float32, -bound, bound)
        b = jax.random.uniform(k2, (fan_out,), jnp.float32, -bound, bound)
        return w.T, b.reshape(1, fan_out)

    keys = jax.random.split(key, 6)
    wa1, ba1 = linear(keys[0], 64, 256)
    wa2, ba2 = linear(keys[1], 256, 128)
    wa3, ba3 = linear(keys[2], 128, 64)
    wo1, bo1 = linear(keys[3], 64, 32)
    wo2, bo2 = linear(keys[4], 32, 16)
    wo3, bo3 = linear(keys[5], 16, 1)
    return (wa1, ba1, wa2, ba2, wa3, ba3, wo1, bo1, wo2, bo2, wo3, bo3)


def net_forward_ref(x, y, params):
    """Plain-JAX f32 reference (original, unfused math)."""
    (wa1, ba1, wa2, ba2, wa3, ba3, wo1, bo1, wo2, bo2, wo3, bo3) = params
    d = y - x
    h = jnp.maximum(d @ wa1 + ba1, 0.0)
    h = jnp.maximum(h @ wa2 + ba2, 0.0)
    y_pred = h @ wa3 + ba3
    g = jnp.maximum(d @ wo1 + bo1, 0.0)
    g = g @ wo2 + bo2
    g = g @ wo3 + bo3
    return y_pred, jax.nn.sigmoid(g)


if __name__ == "__main__":
    key = jax.random.PRNGKey(0)
    kx, ky, kp = jax.random.split(key, 3)
    params = init_params(kp)

    # Pack once, outside the per-call jitted path.
    packed = jax.block_until_ready(pack_params(params))

    # Small case (single tile, whole batch in one grid step).
    B = 8
    x = jax.random.normal(kx, (B, 64), jnp.float32)
    y = jax.random.normal(ky, (B, 64), jnp.float32)
    y_pred, score = net_forward(x, y, packed)
    jax.block_until_ready((y_pred, score))
    y_pred_r, score_r = net_forward_ref(x, y, params)
    assert y_pred.shape == (B, 64) and score.shape == (B, 1)
    # bf16 matmul operands (f32 accumulate) -> loosened tolerances.
    assert jnp.allclose(y_pred, y_pred_r, atol=1e-1, rtol=1e-1)
    assert jnp.allclose(score, score_r, atol=3e-2, rtol=3e-2)

    # Non-divisible batch: exercises ragged last block + multi-step parallel grid.
    B2 = 600
    kx2, ky2 = jax.random.split(jax.random.PRNGKey(1))
    x2 = jax.random.normal(kx2, (B2, 64), jnp.float32)
    y2 = jax.random.normal(ky2, (B2, 64), jnp.float32)
    y_pred2, score2 = net_forward(x2, y2, packed, tb=256)
    jax.block_until_ready((y_pred2, score2))
    y_pred2_r, score2_r = net_forward_ref(x2, y2, params)
    assert y_pred2.shape == (B2, 64) and score2.shape == (B2, 1)
    assert jnp.allclose(y_pred2, y_pred2_r, atol=1e-1, rtol=1e-1)
    assert jnp.allclose(score2, score2_r, atol=3e-2, rtol=3e-2)

    print("KERNEL_OK")
</pallas_src>

<mosaic_0001>
module attributes {stable_mosaic.version = 11 : i64} {
  func.func @_fused_kernel(%arg0: i32, %arg1: memref<8x64xf32, #tpu.memory_space<vmem>>, %arg2: memref<8x64xf32, #tpu.memory_space<vmem>>, %arg3: memref<64x256xbf16, #tpu.memory_space<vmem>>, %arg4: memref<1x256xf32, #tpu.memory_space<vmem>>, %arg5: memref<64x128xbf16, #tpu.memory_space<vmem>>, %arg6: memref<1x128xf32, #tpu.memory_space<vmem>>, %arg7: memref<256x128xbf16, #tpu.memory_space<vmem>>, %arg8: memref<1x128xf32, #tpu.memory_space<vmem>>, %arg9: memref<128x64xbf16, #tpu.memory_space<vmem>>, %arg10: memref<1x64xf32, #tpu.memory_space<vmem>>, %arg11: memref<1x128xf32, #tpu.memory_space<vmem>>, %arg12: memref<1x1xf32, #tpu.memory_space<vmem>>, %arg13: memref<8x64xf32, #tpu.memory_space<vmem>>, %arg14: memref<8x1xf32, #tpu.memory_space<vmem>>) attributes {dimension_semantics = [#tpu.dimension_semantics<parallel>], iteration_bounds = array<i64: 1>, scalar_prefetch = 0 : i64, scratch_operands = 0 : i64, tpu.core_type = #tpu.core_type<tc>, window_params = [{transform_indices = @transform_0, window_bounds = array<i64: 8, 64>}, {transform_indices = @transform_1, window_bounds = array<i64: 8, 64>}, {pipeline_mode = #tpu.pipeline_mode<synchronous>, transform_indices = @transform_2, window_bounds = array<i64: 64, 256>}, {pipeline_mode = #tpu.pipeline_mode<synchronous>, transform_indices = @transform_3, window_bounds = array<i64: 1, 256>}, {pipeline_mode = #tpu.pipeline_mode<synchronous>, transform_indices = @transform_4, window_bounds = array<i64: 64, 128>}, {pipeline_mode = #tpu.pipeline_mode<synchronous>, transform_indices = @transform_5, window_bounds = array<i64: 1, 128>}, {pipeline_mode = #tpu.pipeline_mode<synchronous>, transform_indices = @transform_6, window_bounds = array<i64: 256, 128>}, {pipeline_mode = #tpu.pipeline_mode<synchronous>, transform_indices = @transform_7, window_bounds = array<i64: 1, 128>}, {pipeline_mode = #tpu.pipeline_mode<synchronous>, transform_indices = @transform_8, window_bounds = array<i64: 128, 64>}, {pipeline_mode = #tpu.pipeline_mode<synchronous>, transform_indices = @transform_9, window_bounds = array<i64: 1, 64>}, {pipeline_mode = #tpu.pipeline_mode<synchronous>, transform_indices = @transform_10, window_bounds = array<i64: 1, 128>}, {pipeline_mode = #tpu.pipeline_mode<synchronous>, transform_indices = @transform_11, window_bounds = array<i64: 1, 1>}, {transform_indices = @transform_12, window_bounds = array<i64: 8, 64>}, {transform_indices = @transform_13, window_bounds = array<i64: 8, 1>}]} {
    %c0 = arith.constant 0 : index
    %c0_0 = arith.constant 0 : index
    %0 = vector.load %arg2[%c0, %c0_0] : memref<8x64xf32, #tpu.memory_space<vmem>>, vector<8x64xf32>
    %c0_1 = arith.constant 0 : index
    %c0_2 = arith.constant 0 : index
    %1 = vector.load %arg1[%c0_1, %c0_2] : memref<8x64xf32, #tpu.memory_space<vmem>>, vector<8x64xf32>
    %2 = arith.subf %0, %1 : vector<8x64xf32>
    %3 = arith.truncf %2 : vector<8x64xf32> to vector<8x64xbf16>
    %c0_3 = arith.constant 0 : index
    %c0_4 = arith.constant 0 : index
    %4 = vector.load %arg3[%c0_3, %c0_4] : memref<64x256xbf16, #tpu.memory_space<vmem>>, vector<64x256xbf16>
    %cst = arith.constant dense<0.000000e+00> : vector<8x256xf32>
    %5 = tpu.matmul %3, %4, %cst {dimension_numbers = #tpu.dot_dimension_numbers<[1], [0], [0], [1], [0, 0, 1, 1], [], []>} : vector<8x64xbf16>, vector<64x256xbf16>, vector<8x256xf32> -> vector<8x256xf32>
    %c0_5 = arith.constant 0 : index
    %c0_6 = arith.constant 0 : index
    %6 = vector.load %arg4[%c0_5, %c0_6] : memref<1x256xf32, #tpu.memory_space<vmem>>, vector<1x256xf32>
    %7 = vector.broadcast %6 : vector<1x256xf32> to vector<8x256xf32>
    %8 = arith.addf %5, %7 : vector<8x256xf32>
    %cst_7 = arith.constant 0.000000e+00 : f32
    %9 = vector.broadcast %cst_7 : f32 to vector<8x256xf32>
    %10 = arith.maximumf %8, %9 : vector<8x256xf32>
    %11 = arith.truncf %10 : vector<8x256xf32> to vector<8x256xbf16>
    %c0_8 = arith.constant 0 : index
    %c0_9 = arith.constant 0 : index
    %12 = vector.load %arg7[%c0_8, %c0_9] : memref<256x128xbf16, #tpu.memory_space<vmem>>, vector<256x128xbf16>
    %cst_10 = arith.constant dense<0.000000e+00> : vector<8x128xf32>
    %13 = tpu.matmul %11, %12, %cst_10 {dimension_numbers = #tpu.dot_dimension_numbers<[1], [0], [0], [1], [0, 0, 1, 1], [], []>} : vector<8x256xbf16>, vector<256x128xbf16>, vector<8x128xf32> -> vector<8x128xf32>
    %c0_11 = arith.constant 0 : index
    %c0_12 = arith.constant 0 : index
    %14 = vector.load %arg8[%c0_11, %c0_12] : memref<1x128xf32, #tpu.memory_space<vmem>>, vector<1x128xf32>
    %15 = vector.broadcast %14 : vector<1x128xf32> to vector<8x128xf32>
    %16 = arith.addf %13, %15 : vector<8x128xf32>
    %cst_13 = arith.constant 0.000000e+00 : f32
    %17 = vector.broadcast %cst_13 : f32 to vector<8x128xf32>
    %18 = arith.maximumf %16, %17 : vector<8x128xf32>
    %19 = arith.truncf %18 : vector<8x128xf32> to vector<8x128xbf16>
    %c0_14 = arith.constant 0 : index
    %c0_15 = arith.constant 0 : index
    %20 = vector.load %arg9[%c0_14, %c0_15] : memref<128x64xbf16, #tpu.memory_space<vmem>>, vector<128x64xbf16>
    %cst_16 = arith.constant dense<0.000000e+00> : vector<8x64xf32>
    %21 = tpu.matmul %19, %20, %cst_16 {dimension_numbers = #tpu.dot_dimension_numbers<[1], [0], [0], [1], [0, 0, 1, 1], [], []>} : vector<8x128xbf16>, vector<128x64xbf16>, vector<8x64xf32> -> vector<8x64xf32>
    %c0_17 = arith.constant 0 : index
    %c0_18 = arith.constant 0 : index
    %22 = vector.load %arg10[%c0_17, %c0_18] : memref<1x64xf32, #tpu.memory_space<vmem>>, vector<1x64xf32>
    %23 = vector.broadcast %22 : vector<1x64xf32> to vector<8x64xf32>
    %24 = arith.addf %21, %23 : vector<8x64xf32>
    %c0_19 = arith.constant 0 : index
    %c0_20 = arith.constant 0 : index
    %25 = vector.load %arg13[%c0_19, %c0_20] : memref<8x64xf32, #tpu.memory_space<vmem>>, vector<8x64xf32>
    tpu.vector_store %arg13[%c0_19, %c0_20], %24 {strides = array<i32>} : memref<8x64xf32, #tpu.memory_space<vmem>>, vector<8x64xf32>,
    %c0_21 = arith.constant 0 : index
    %c0_22 = arith.constant 0 : index
    %26 = vector.load %arg5[%c0_21, %c0_22] : memref<64x128xbf16, #tpu.memory_space<vmem>>, vector<64x128xbf16>
    %cst_23 = arith.constant dense<0.000000e+00> : vector<8x128xf32>
    %27 = tpu.matmul %3, %26, %cst_23 {dimension_numbers = #tpu.dot_dimension_numbers<[1], [0], [0], [1], [0, 0, 1, 1], [], []>} : vector<8x64xbf16>, vector<64x128xbf16>, vector<8x128xf32> -> vector<8x128xf32>
    %c0_24 = arith.constant 0 : index
    %c0_25 = arith.constant 0 : index
    %28 = vector.load %arg6[%c0_24, %c0_25] : memref<1x128xf32, #tpu.memory_space<vmem>>, vector<1x128xf32>
    %29 = vector.broadcast %28 : vector<1x128xf32> to vector<8x128xf32>
    %30 = arith.addf %27, %29 : vector<8x128xf32>
    %cst_26 = arith.constant 0.000000e+00 : f32
    %31 = vector.broadcast %cst_26 : f32 to vector<8x128xf32>
    %32 = arith.maximumf %30, %31 : vector<8x128xf32>
    %c0_27 = arith.constant 0 : index
    %c0_28 = arith.constant 0 : index
    %33 = vector.load %arg11[%c0_27, %c0_28] : memref<1x128xf32, #tpu.memory_space<vmem>>, vector<1x128xf32>
    %34 = vector.broadcast %33 : vector<1x128xf32> to vector<8x128xf32>
    %35 = arith.mulf %32, %34 : vector<8x128xf32>
    %cst_29 = arith.constant dense<0.000000e+00> : vector<8xf32>
    %36 = vector.multi_reduction <add>, %35, %cst_29 [1] : vector<8x128xf32> to vector<8xf32>
    %37 = vector.shape_cast %36 : vector<8xf32> to vector<8x1xf32>
    %c0_30 = arith.constant 0 : index
    %c0_31 = arith.constant 0 : index
    %38 = vector.load %arg12[%c0_30, %c0_31] : memref<1x1xf32, #tpu.memory_space<vmem>>, vector<1x1xf32>
    %39 = vector.broadcast %38 : vector<1x1xf32> to vector<8x1xf32>
    %40 = arith.addf %37, %39 : vector<8x1xf32>
    %41 = arith.negf %40 : vector<8x1xf32>
    %42 = math.exp %41 : vector<8x1xf32>
    %cst_32 = arith.constant 1.000000e+00 : f32
    %43 = vector.broadcast %cst_32 : f32 to vector<8x1xf32>
    %44 = arith.addf %43, %42 : vector<8x1xf32>
    %45 = arith.divf %43, %44 : vector<8x1xf32>
    %c0_33 = arith.constant 0 : index
    %c0_34 = arith.constant 0 : index
    %46 = vector.load %arg14[%c0_33, %c0_34] : memref<8x1xf32, #tpu.memory_space<vmem>>, vector<8x1xf32>
    tpu.vector_store %arg14[%c0_33, %c0_34], %45 {strides = array<i32>} : memref<8x1xf32, #tpu.memory_space<vmem>>, vector<8x1xf32>,
    return
  }
  func.func @transform_0(%arg0: i32) -> (i32, i32) {
    %c0_i32 = arith.constant 0 : i32
    %c0_i32_0 = arith.constant 0 : i32
    return %arg0, %c0_i32 : i32, i32
  }
  func.func @transform_1(%arg0: i32) -> (i32, i32) {
    %c0_i32 = arith.constant 0 : i32
    %c0_i32_0 = arith.constant 0 : i32
    return %arg0, %c0_i32 : i32, i32
  }
  func.func @transform_2(%arg0: i32) -> (i32, i32) {
    %c0_i32 = arith.constant 0 : i32
    %c0_i32_0 = arith.constant 0 : i32
    %c0_i32_1 = arith.constant 0 : i32
    return %c0_i32, %c0_i32_0 : i32, i32
  }
  func.func @transform_3(%arg0: i32) -> (i32, i32) {
    %c0_i32 = arith.constant 0 : i32
    %c0_i32_0 = arith.constant 0 : i32
    %c0_i32_1 = arith.constant 0 : i32
    return %c0_i32, %c0_i32_0 : i32, i32
  }
  func.func @transform_4(%arg0: i32) -> (i32, i32) {
    %c0_i32 = arith.constant 0 : i32
    %c0_i32_0 = arith.constant 0 : i32
    %c0_i32_1 = arith.constant 0 : i32
    return %c0_i32, %c0_i32_0 : i32, i32
  }
  func.func @transform_5(%arg0: i32) -> (i32, i32) {
    %c0_i32 = arith.constant 0 : i32
    %c0_i32_0 = arith.constant 0 : i32
    %c0_i32_1 = arith.constant 0 : i32
    return %c0_i32, %c0_i32_0 : i32, i32
  }
  func.func @transform_6(%arg0: i32) -> (i32, i32) {
    %c0_i32 = arith.constant 0 : i32
    %c0_i32_0 = arith.constant 0 : i32
    %c0_i32_1 = arith.constant 0 : i32
    return %c0_i32, %c0_i32_0 : i32, i32
  }
  func.func @transform_7(%arg0: i32) -> (i32, i32) {
    %c0_i32 = arith.constant 0 : i32
    %c0_i32_0 = arith.constant 0 : i32
    %c0_i32_1 = arith.constant 0 : i32
    return %c0_i32, %c0_i32_0 : i32, i32
  }
  func.func @transform_8(%arg0: i32) -> (i32, i32) {
    %c0_i32 = arith.constant 0 : i32
    %c0_i32_0 = arith.constant 0 : i32
    %c0_i32_1 = arith.constant 0 : i32
    return %c0_i32, %c0_i32_0 : i32, i32
  }
  func.func @transform_9(%arg0: i32) -> (i32, i32) {
    %c0_i32 = arith.constant 0 : i32
    %c0_i32_0 = arith.constant 0 : i32
    %c0_i32_1 = arith.constant 0 : i32
    return %c0_i32, %c0_i32_0 : i32, i32
  }
  func.func @transform_10(%arg0: i32) -> (i32, i32) {
    %c0_i32 = arith.constant 0 : i32
    %c0_i32_0 = arith.constant 0 : i32
    %c0_i32_1 = arith.constant 0 : i32
    return %c0_i32, %c0_i32_0 : i32, i32
  }
  func.func @transform_11(%arg0: i32) -> (i32, i32) {
    %c0_i32 = arith.constant 0 : i32
    %c0_i32_0 = arith.constant 0 : i32
    %c0_i32_1 = arith.constant 0 : i32
    return %c0_i32, %c0_i32_0 : i32, i32
  }
  func.func @transform_12(%arg0: i32) -> (i32, i32) {
    %c0_i32 = arith.constant 0 : i32
    %c0_i32_0 = arith.constant 0 : i32
    return %arg0, %c0_i32 : i32, i32
  }
  func.func @transform_13(%arg0: i32) -> (i32, i32) {
    %c0_i32 = arith.constant 0 : i32
    %c0_i32_0 = arith.constant 0 : i32
    return %arg0, %c0_i32 : i32, i32
  }
}

</mosaic_0001>

<llo_original>
// kernel: net_forward.1
$region0: #{net_forward.1}
  #allocation0 [shape = 'u32[]', space=smem, size = 0x4, offset = 0x4, fixed_abs, tag = 'smem constant byte address 0x4 - core index']
  #allocation1 [shape = 'u32[144,128]{1,0:T(1,128)}', space=vmem, size = 0x12000, scoped, tag = 'internal scratch']
  #allocation2 [shape = 'f32[1,1]{1,0:T(1,128)S(1)}', space=vmem, size = 0x200, scoped, tag = 'scoped memory for net_forward.1']
  %s0 = inlined_call_operand.hbm [shape: f32[8,64], index: 0, kind: input, shape index: {}]
  %s1 = inlined_call_operand.hbm [shape: f32[8,64], index: 1, kind: input, shape index: {}]
  %s2 = inlined_call_operand.vmem [shape: bf16[64,256], index: 2, kind: input, shape index: {}]
  %s3 = inlined_call_operand.vmem [shape: f32[1,256], index: 3, kind: input, shape index: {}]
  %s4 = inlined_call_operand.vmem [shape: bf16[64,128], index: 4, kind: input, shape index: {}]
  %s5 = inlined_call_operand.hbm [shape: f32[1,128], index: 5, kind: input, shape index: {}]
  %s6 = inlined_call_operand.hbm [shape: bf16[256,128], index: 6, kind: input, shape index: {}]
  %s7 = inlined_call_operand.hbm [shape: f32[1,128], index: 7, kind: input, shape index: {}]
  %s8 = inlined_call_operand.vmem [shape: bf16[128,64], index: 8, kind: input, shape index: {}]
  %s9 = inlined_call_operand.vmem [shape: f32[1,64], index: 9, kind: input, shape index: {}]
  %s10 = inlined_call_operand.vmem [shape: f32[1,128], index: 10, kind: input, shape index: {}]
  %s11 = inlined_call_operand.<no memory space> [shape: f32[1,1], index: 11, kind: input, shape index: {}]
  %s12 = inlined_call_operand.hbm [shape: f32[8,64], index: 12, kind: output, shape index: {0}]
  %s13 = inlined_call_operand.vmem [shape: f32[8,1], index: 13, kind: output, shape index: {1}]
  %14 = xla_tuple %s12, %s13
  %s15 = sld [smem:[#allocation0]]
  $region86: #{net_forward.1} parent=0
    _
  %s17 = ssub.s32 1, %s15
  %s18 = scalar_select 0, %s17, %s15
  %v19 = vstv %s11
  %20 = vst [vmem:[#allocation2] sm:$0x1] %v19
  $region1: #{net_forward.1} parent=0
    #allocation3 [shape = 'u8[4096]{0}', space=vmem, size = 0x1000, scoped, tag = 'input window, operand 0, single buffered']
    #allocation4 [shape = 's32[1]{0}', space=sflag, size = 0x4, scoped, tag = 'scoped memory for net_forward.1']
    #allocation5 [shape = 's32[1]{0}', space=sflag, size = 0x4, scoped, tag = 'scoped memory for net_forward.1']
    #allocation6 [shape = 'u8[4096]{0}', space=vmem, size = 0x1000, scoped, tag = 'input window, operand 1, single buffered']
    #allocation7 [shape = 's32[1]{0}', space=sflag, size = 0x4, scoped, tag = 'scoped memory for net_forward.1']
    #allocation8 [shape = 'u8[512]{0}', space=vmem, size = 0x400, scoped, tag = 'input window, operand 5, single buffered']
    #allocation9 [shape = 'u8[65536]{0}', space=vmem, size = 0x10000, scoped, tag = 'input window, operand 6, single buffered']
    #allocation10 [shape = 's32[1]{0}', space=sflag, size = 0x4, scoped, tag = 'scoped memory for net_forward.1']
    #allocation11 [shape = 'u8[512]{0}', space=vmem, size = 0x400, scoped, tag = 'input window, operand 7, single buffered']
    #allocation12 [shape = 'u8[4096]{0}', space=vmem, size = 0x1000, scoped, tag = 'output window, operand 0, single buffered']
    %21 = vsyncpa [#allocation4], 0
    %22 = vsyncpa [#allocation7], 0
    %23 = vsyncpa [#allocation10], 0
    %24 = vsyncpa [#allocation5], 0
    // Predicated region
    $region2: #{net_forward.1} parent=1 // pred_check
      _
    $region3: #{net_forward.1} parent=1 // pred_check_branch
      %26 = sbr.rel (0) target = $region5
    $region4: #{net_forward.1} parent=1 // pred_region
      %s28 = ssub.s32 128, 128
      %29 = vsyncadd [#allocation4], %s28
      %s31 = sshll.u32 [#allocation3], 4
      %s32 = int_to_ptr.vmem [resolvable:$true] %s31
      %34 = dma.hbm_to_vmem [thread:$0]  %s0, 128, %s32, [#allocation4]
    $region5: #{net_forward.1} parent=1 // pred_fallthru
      _
    // Predicated region
    $region6: #{net_forward.1} parent=1 // pred_check
      _
    $region7: #{net_forward.1} parent=1 // pred_check_branch
      %36 = sbr.rel (0) target = $region9
    $region8: #{net_forward.1} parent=1 // pred_region
      %s38 = ssub.s32 128, 128
      %39 = vsyncadd [#allocation7], %s38
      %s41 = sshll.u32 [#allocation6], 4
      %s42 = int_to_ptr.vmem [resolvable:$true] %s41
      %44 = dma.hbm_to_vmem [thread:$0]  %s1, 128, %s42, [#allocation7]
    $region9: #{net_forward.1} parent=1 // pred_fallthru
      _
    // Predicated region
    $region10: #{net_forward.1} parent=1 // pred_check
      _
    $region11: #{net_forward.1} parent=1 // pred_check_branch
      %46 = sbr.rel (0) target = $region13
    $region12: #{net_forward.1} parent=1 // pred_region
      _
    $region13: #{net_forward.1} parent=1 // pred_fallthru
      _
    // Predicated region
    $region14: #{net_forward.1} parent=1 // pred_check
      _
    $region15: #{net_forward.1} parent=1 // pred_check_branch
      %48 = sbr.rel (0) target = $region17
    $region16: #{net_forward.1} parent=1 // pred_region
      _
    $region17: #{net_forward.1} parent=1 // pred_fallthru
      _
    // Predicated region
    $region18: #{net_forward.1} parent=1 // pred_check
      _
    $region19: #{net_forward.1} parent=1 // pred_check_branch
      %50 = sbr.rel (0) target = $region21
    $region20: #{net_forward.1} parent=1 // pred_region
      _
    $region21: #{net_forward.1} parent=1 // pred_fallthru
      _
    // Predicated region
    $region22: #{net_forward.1} parent=1 // pred_check
      _
    $region23: #{net_forward.1} parent=1 // pred_check_branch
      %52 = sbr.rel (0) target = $region25
    $region24: #{net_forward.1} parent=1 // pred_region
      %s54 = ssub.s32 16, 16
      %55 = vsyncadd [#allocation7], %s54
      %s57 = sshll.u32 [#allocation8], 4
      %s58 = int_to_ptr.vmem [resolvable:$true] %s57
      %60 = dma.hbm_to_vmem [thread:$0]  %s5, 16, %s58, [#allocation7]
    $region25: #{net_forward.1} parent=1 // pred_fallthru
      _
    // Predicated region
    $region26: #{net_forward.1} parent=1 // pred_check
      _
    $region27: #{net_forward.1} parent=1 // pred_check_branch
      %62 = sbr.rel (0) target = $region29
    $region28: #{net_forward.1} parent=1 // pred_region
      %s64 = ssub.s32 2048, 2048
      %65 = vsyncadd [#allocation10], %s64
      %s66 = sshll.u32 [#allocation9], 4
      %s67 = int_to_ptr.vmem [resolvable:$true] %s66
      %72 = dma.hbm_to_vmem [thread:$0]  %s6, 2048, %s67, [#allocation10], 64, 64, 4
    $region29: #{net_forward.1} parent=1 // pred_fallthru
      _
    // Predicated region
    $region30: #{net_forward.1} parent=1 // pred_check
      _
    $region31: #{net_forward.1} parent=1 // pred_check_branch
      %74 = sbr.rel (0) target = $region33
    $region32: #{net_forward.1} parent=1 // pred_region
      %s76 = ssub.s32 16, 16
      %77 = vsyncadd [#allocation10], %s76
      %s79 = sshll.u32 [#allocation11], 4
      %s80 = int_to_ptr.vmem [resolvable:$true] %s79
      %82 = dma.hbm_to_vmem [thread:$0]  %s7, 16, %s80, [#allocation10]
    $region33: #{net_forward.1} parent=1 // pred_fallthru
      _
    // Predicated region
    $region34: #{net_forward.1} parent=1 // pred_check
      _
    $region35: #{net_forward.1} parent=1 // pred_check_branch
      %84 = sbr.rel (0) target = $region37
    $region36: #{net_forward.1} parent=1 // pred_region
      _
    $region37: #{net_forward.1} parent=1 // pred_fallthru
      _
    // Predicated region
    $region38: #{net_forward.1} parent=1 // pred_check
      _
    $region39: #{net_forward.1} parent=1 // pred_check_branch
      %86 = sbr.rel (0) target = $region41
    $region40: #{net_forward.1} parent=1 // pred_region
      _
    $region41: #{net_forward.1} parent=1 // pred_fallthru
      _
    // Predicated region
    $region42: #{net_forward.1} parent=1 // pred_check
      _
    $region43: #{net_forward.1} parent=1 // pred_check_branch
      %88 = sbr.rel (0) target = $region45
    $region44: #{net_forward.1} parent=1 // pred_region
      _
    $region45: #{net_forward.1} parent=1 // pred_fallthru
      _
    // Predicated region
    $region46: #{net_forward.1} parent=1 // pred_check
      _
    $region47: #{net_forward.1} parent=1 // pred_check_branch
      %90 = sbr.rel (0) target = $region49
    $region48: #{net_forward.1} parent=1 // pred_region
      _
    $region49: #{net_forward.1} parent=1 // pred_fallthru
      _
    // Predicated region
    $region50: #{net_forward.1} parent=1 // pred_check
      _
    $region51: #{net_forward.1} parent=1 // pred_check_branch
      %92 = sbr.rel (0) target = $region53
    $region52: #{net_forward.1} parent=1 // pred_region
      %93 = dma.done [#allocation4], 128
    $region53: #{net_forward.1} parent=1 // pred_fallthru
      _
    // Predicated region
    $region54: #{net_forward.1} parent=1 // pred_check
      _
    $region55: #{net_forward.1} parent=1 // pred_check_branch
      %95 = sbr.rel (0) target = $region57
    $region56: #{net_forward.1} parent=1 // pred_region
      %96 = dma.done [#allocation7], 128
    $region57: #{net_forward.1} parent=1 // pred_fallthru
      _
    // Predicated region
    $region58: #{net_forward.1} parent=1 // pred_check
      _
    $region59: #{net_forward.1} parent=1 // pred_check_branch
      %98 = sbr.rel (0) target = $region61
    $region60: #{net_forward.1} parent=1 // pred_region
      %99 = dma.done [#allocation7], 16
    $region61: #{net_forward.1} parent=1 // pred_fallthru
      _
    // Predicated region
    $region62: #{net_forward.1} parent=1 // pred_check
      _
    $region63: #{net_forward.1} parent=1 // pred_check_branch
      %101 = sbr.rel (0) target = $region65
    $region64: #{net_forward.1} parent=1 // pred_region
      %102 = dma.done [#allocation10], 2048
    $region65: #{net_forward.1} parent=1 // pred_fallthru
      _
    // Predicated region
    $region66: #{net_forward.1} parent=1 // pred_check
      _
    $region67: #{net_forward.1} parent=1 // pred_check_branch
      %104 = sbr.rel (0) target = $region69
    $region68: #{net_forward.1} parent=1 // pred_region
      %105 = dma.done [#allocation10], 16
    $region69: #{net_forward.1} parent=1 // pred_fallthru
      _
    %v107 = vld [vmem:[#allocation6] sm:$0xff]
    %v108 = vld [vmem:[#allocation3] sm:$0xff]
    %v109 = vsub.f32 %v107, %v108
    %v110 = vpack.c.bf16 %v109, %v109
    %v111 = vld [vmem:[%s2] sm:$0xff]
    %v112 = vld [vmem:[%s2 + $0x8] sm:$0xff]
    %v113 = vld [vmem:[%s2 + $0x10] sm:$0xff]
    %v114 = vld [vmem:[%s2 + $0x18] sm:$0xff]
    %v115 = vld [vmem:[%s2 + $0x20] sm:$0xff]
    %v116 = vld [vmem:[%s2 + $0x28] sm:$0xff]
    %v117 = vld [vmem:[%s2 + $0x30] sm:$0xff]
    %v118 = vld [vmem:[%s2 + $0x38] sm:$0xff]
    %v119 = vld [vmem:[%s3] sm:$0x3]
    %v121 = vlaneseq
    %v122 = vshrl.u32 %v121, 7
    %v123 = vsub.s32 0, %v122
    %v124 = vrot.slane %v119, %v123
    %v125 = vlaneseq
    %v126 = vshrl.u32 %v125, 7
    %v127 = vsub.s32 1, %v126
    %v128 = vrot.slane %v119, %v127
    %v139 = vunpack.c.l.b16 %v111
    %v140 = vunpack.c.h.b16 %v111
    %v141 = vunpack.c.l.b16 %v112
    %v142 = vunpack.c.h.b16 %v112
    %v143 = vunpack.c.l.b16 %v113
    %v144 = vunpack.c.h.b16 %v113
    %v145 = vunpack.c.l.b16 %v114
    %v146 = vunpack.c.h.b16 %v114
    %v147 = vunpack.c.l.b16 %v115
    %v148 = vunpack.c.h.b16 %v115
    %v149 = vunpack.c.l.b16 %v116
    %v150 = vunpack.c.h.b16 %v116
    %v151 = vunpack.c.l.b16 %v117
    %v152 = vunpack.c.h.b16 %v117
    %v153 = vunpack.c.l.b16 %v118
    %v154 = vunpack.c.h.b16 %v118
    %v155 = vpack.c.b16 %v141, %v139
    %v156 = vpack.c.b16 %v142, %v140
    %v157 = vpack.c.b16 %v145, %v143
    %v158 = vpack.c.b16 %v146, %v144
    %v159 = vpack.c.b16 %v149, %v147
    %v160 = vpack.c.b16 %v150, %v148
    %v161 = vpack.c.b16 %v153, %v151
    %v162 = vpack.c.b16 %v154, %v152
    %vm171 = vcmask 523264
    %v173 = vsel %vm171, %v110, 0
    %175 = vmatprep.subr.bf16.mxu0 %v156
    %176 = vmatpush1.bf16.msra.mxu0 %v155
    %177 = vmatprep.subr.bf16.mxu0 %v158
    %178 = vmatpush1.bf16.msra.mxu0 %v157
    %179 = vmatprep.subr.bf16.mxu0 %v160
    %180 = vmatpush1.bf16.msra.mxu0 %v159
    %181 = vmatprep.subr.bf16.mxu0 %v162
    %182 = vmatpush1.bf16.msra.mxu0 %v161
    %183 = vmatprep.subr.bf16.mxu0 0
    %184 = vmatpush1.bf16.msra.mxu0 0
    %185 = vmatprep.subr.bf16.mxu0 0
    %186 = vmatpush1.bf16.msra.mxu0 0
    %187 = vmatprep.subr.bf16.mxu0 0
    %188 = vmatpush1.bf16.msra.mxu0 0
    %189 = vmatprep.subr.bf16.mxu0 0
    %190 = vmatpush1.bf16.msra.mxu0 0
    %191 = vmatprep.subr.bf16.mxu0 0
    %192 = vmatpush1.bf16.msra.mxu0 0
    %193 = vmatprep.subr.bf16.mxu0 0
    %194 = vmatpush1.bf16.msra.mxu0 0
    %195 = vmatprep.subr.bf16.mxu0 0
    %196 = vmatpush1.bf16.msra.mxu0 0
    %197 = vmatprep.subr.bf16.mxu0 0
    %198 = vmatpush1.bf16.msra.mxu0 0
    %199 = vmatprep.subr.bf16.mxu0 0
    %200 = vmatpush1.bf16.msra.mxu0 0
    %201 = vmatprep.subr.bf16.mxu0 0
    %202 = vmatpush1.bf16.msra.mxu0 0
    %203 = vmatprep.subr.bf16.mxu0 0
    %204 = vmatpush1.bf16.msra.mxu0 0
    %205 = vmatprep.subr.bf16.mxu0 0
    %206 = vmatpush1.bf16.msra.mxu0 0
    %207 = vmatprep.mubr.bf16.mxu0 0
    %208 = vmatmul.mubr.bf16.gmra.mrb[0].mxu0 %v173
    %v209 = vpop.f32.mrb[0].mxu0
    %v210 = vadd.f32 %v124, %v209
    %v211 = vpop.f32.mrb[0].mxu0
    %v212 = vadd.f32 %v128, %v211
    %v213 = vpop.f32.mrb[0].mxu0
    %v214 = vpop.f32.mrb[0].mxu0
    %215 = vdwg.mxu0
    %v216 = vmax.f32 %v210, 0.0
    %v217 = vmax.f32 %v212, 0.0
    %v218 = vpack.c.bf16 %v216, %v216
    %v219 = vpack.c.bf16 %v217, %v217
    %v220 = vld [vmem:[#allocation9] sm:$0xf]
    %v221 = vld [vmem:[#allocation9 + $0x4] sm:$0xf]
    %v222 = vld [vmem:[#allocation9 + $0x8] sm:$0xf]
    %v223 = vld [vmem:[#allocation9 + $0xc] sm:$0xf]
    %v224 = vld [vmem:[#allocation9 + $0x10] sm:$0xf]
    %v225 = vld [vmem:[#allocation9 + $0x14] sm:$0xf]
    %v226 = vld [vmem:[#allocation9 + $0x18] sm:$0xf]
    %v227 = vld [vmem:[#allocation9 + $0x1c] sm:$0xf]
    %v228 = vld [vmem:[#allocation9 + $0x20] sm:$0xf]
    %v229 = vld [vmem:[#allocation9 + $0x24] sm:$0xf]
    %v230 = vld [vmem:[#allocation9 + $0x28] sm:$0xf]
    %v231 = vld [vmem:[#allocation9 + $0x2c] sm:$0xf]
    %v232 = vld [vmem:[#allocation9 + $0x30] sm:$0xf]
    %v233 = vld [vmem:[#allocation9 + $0x34] sm:$0xf]
    %v234 = vld [vmem:[#allocation9 + $0x38] sm:$0xf]
    %v235 = vld [vmem:[#allocation9 + $0x3c] sm:$0xf]
    %v236 = vld [vmem:[#allocation9 + $0x40] sm:$0xf]
    %v237 = vld [vmem:[#allocation9 + $0x44] sm:$0xf]
    %v238 = vld [vmem:[#allocation9 + $0x48] sm:$0xf]
    %v239 = vld [vmem:[#allocation9 + $0x4c] sm:$0xf]
    %v240 = vld [vmem:[#allocation9 + $0x50] sm:$0xf]
    %v241 = vld [vmem:[#allocation9 + $0x54] sm:$0xf]
    %v242 = vld [vmem:[#allocation9 + $0x58] sm:$0xf]
    %v243 = vld [vmem:[#allocation9 + $0x5c] sm:$0xf]
    %v244 = vld [vmem:[#allocation9 + $0x60] sm:$0xf]
    %v245 = vld [vmem:[#allocation9 + $0x64] sm:$0xf]
    %v246 = vld [vmem:[#allocation9 + $0x68] sm:$0xf]
    %v247 = vld [vmem:[#allocation9 + $0x6c] sm:$0xf]
    %v248 = vld [vmem:[#allocation9 + $0x70] sm:$0xf]
    %v249 = vld [vmem:[#allocation9 + $0x74] sm:$0xf]
    %v250 = vld [vmem:[#allocation9 + $0x78] sm:$0xf]
    %v251 = vld [vmem:[#allocation9 + $0x7c] sm:$0xf]
    %v252 = vld [vmem:[#allocation11] sm:$0x1]
    %v254 = vlaneseq
    %v255 = vshrl.u32 %v254, 7
    %v256 = vsub.s32 0, %v255
    %v257 = vrot.slane %v252, %v256
    %v291 = vunpack.c.l.b16 %v220
    %v292 = vunpack.c.l.b16 %v221
    %v293 = vunpack.c.l.b16 %v222
    %v294 = vunpack.c.l.b16 %v223
    %v295 = vunpack.c.l.b16 %v224
    %v296 = vunpack.c.l.b16 %v225
    %v297 = vunpack.c.l.b16 %v226
    %v298 = vunpack.c.l.b16 %v227
    %v299 = vunpack.c.l.b16 %v228
    %v300 = vunpack.c.l.b16 %v229
    %v301 = vunpack.c.l.b16 %v230
    %v302 = vunpack.c.l.b16 %v231
    %v303 = vunpack.c.l.b16 %v232
    %v304 = vunpack.c.l.b16 %v233
    %v305 = vunpack.c.l.b16 %v234
    %v306 = vunpack.c.l.b16 %v235
    %v307 = vunpack.c.l.b16 %v236
    %v308 = vunpack.c.l.b16 %v237
    %v309 = vunpack.c.l.b16 %v238
    %v310 = vunpack.c.l.b16 %v239
    %v311 = vunpack.c.l.b16 %v240
    %v312 = vunpack.c.l.b16 %v241
    %v313 = vunpack.c.l.b16 %v242
    %v314 = vunpack.c.l.b16 %v243
    %v315 = vunpack.c.l.b16 %v244
    %v316 = vunpack.c.l.b16 %v245
    %v317 = vunpack.c.l.b16 %v246
    %v318 = vunpack.c.l.b16 %v247
    %v319 = vunpack.c.l.b16 %v248
    %v320 = vunpack.c.l.b16 %v249
    %v321 = vunpack.c.l.b16 %v250
    %v322 = vunpack.c.l.b16 %v251
    %v323 = vpack.c.b16 %v292, %v291
    %v324 = vpack.c.b16 %v294, %v293
    %v325 = vpack.c.b16 %v296, %v295
    %v326 = vpack.c.b16 %v298, %v297
    %v327 = vpack.c.b16 %v300, %v299
    %v328 = vpack.c.b16 %v302, %v301
    %v329 = vpack.c.b16 %v304, %v303
    %v330 = vpack.c.b16 %v306, %v305
    %v331 = vpack.c.b16 %v308, %v307
    %v332 = vpack.c.b16 %v310, %v309
    %v333 = vpack.c.b16 %v312, %v311
    %v334 = vpack.c.b16 %v314, %v313
    %v335 = vpack.c.b16 %v316, %v315
    %v336 = vpack.c.b16 %v318, %v317
    %v337 = vpack.c.b16 %v320, %v319
    %v338 = vpack.c.b16 %v322, %v321
    %355 = vmatprep.subr.bf16.mxu0 0
    %356 = vmatpush1.bf16.msra.mxu0 %v323
    %357 = vmatprep.subr.bf16.mxu0 0
    %358 = vmatpush1.bf16.msra.mxu0 %v324
    %359 = vmatprep.subr.bf16.mxu0 0
    %360 = vmatpush1.bf16.msra.mxu0 %v325
    %361 = vmatprep.subr.bf16.mxu0 0
    %362 = vmatpush1.bf16.msra.mxu0 %v326
    %363 = vmatprep.subr.bf16.mxu0 0
    %364 = vmatpush1.bf16.msra.mxu0 %v327
    %365 = vmatprep.subr.bf16.mxu0 0
    %366 = vmatpush1.bf16.msra.mxu0 %v328
    %367 = vmatprep.subr.bf16.mxu0 0
    %368 = vmatpush1.bf16.msra.mxu0 %v329
    %369 = vmatprep.subr.bf16.mxu0 0
    %370 = vmatpush1.bf16.msra.mxu0 %v330
    %371 = vmatprep.subr.bf16.mxu0 0
    %372 = vmatpush1.bf16.msra.mxu0 %v331
    %373 = vmatprep.subr.bf16.mxu0 0
    %374 = vmatpush1.bf16.msra.mxu0 %v332
    %375 = vmatprep.subr.bf16.mxu0 0
    %376 = vmatpush1.bf16.msra.mxu0 %v333
    %377 = vmatprep.subr.bf16.mxu0 0
    %378 = vmatpush1.bf16.msra.mxu0 %v334
    %379 = vmatprep.subr.bf16.mxu0 0
    %380 = vmatpush1.bf16.msra.mxu0 %v335
    %381 = vmatprep.subr.bf16.mxu0 0
    %382 = vmatpush1.bf16.msra.mxu0 %v336
    %383 = vmatprep.subr.bf16.mxu0 0
    %384 = vmatpush1.bf16.msra.mxu0 %v337
    %385 = vmatprep.subr.bf16.mxu0 0
    %386 = vmatpush1.bf16.msra.mxu0 %v338
    %387 = vmatprep.mubr.bf16.mxu0 %v219
    %388 = vmatmul.mubr.bf16.gmra.mrb[0].mxu0 %v218
    %v389 = vpop.f32.mrb[0].mxu0
    %v390 = vadd.f32 %v257, %v389
    %v391 = vpop.f32.mrb[0].mxu0
    %v392 = vpop.f32.mrb[0].mxu0
    %v393 = vpop.f32.mrb[0].mxu0
    %394 = vdwg.mxu0
    %v395 = vmax.f32 %v390, 0.0
    %v396 = vpack.c.bf16 %v395, %v395
    %v397 = vld [vmem:[%s8] sm:$0xf]
    %v398 = vld [vmem:[%s8 + $0x4] sm:$0xf]
    %v399 = vld [vmem:[%s8 + $0x8] sm:$0xf]
    %v400 = vld [vmem:[%s8 + $0xc] sm:$0xf]
    %v401 = vld [vmem:[%s8 + $0x10] sm:$0xf]
    %v402 = vld [vmem:[%s8 + $0x14] sm:$0xf]
    %v403 = vld [vmem:[%s8 + $0x18] sm:$0xf]
    %v404 = vld [vmem:[%s8 + $0x1c] sm:$0xf]
    %v405 = vld [vmem:[%s8 + $0x20] sm:$0xf]
    %v406 = vld [vmem:[%s8 + $0x24] sm:$0xf]
    %v407 = vld [vmem:[%s8 + $0x28] sm:$0xf]
    %v408 = vld [vmem:[%s8 + $0x2c] sm:$0xf]
    %v409 = vld [vmem:[%s8 + $0x30] sm:$0xf]
    %v410 = vld [vmem:[%s8 + $0x34] sm:$0xf]
    %v411 = vld [vmem:[%s8 + $0x38] sm:$0xf]
    %v412 = vld [vmem:[%s8 + $0x3c] sm:$0xf]
    %v413 = vld [vmem:[%s9] sm:$0x1]
    %v415 = vlaneseq
    %v416 = vshrl.u32 %v415, 7
    %v417 = vsub.s32 0, %v416
    %v418 = vrot.slane %v413, %v417
    %v436 = vunpack.c.l.b16 %v397
    %v437 = vunpack.c.l.b16 %v398
    %v438 = vunpack.c.l.b16 %v399
    %v439 = vunpack.c.l.b16 %v400
    %v440 = vunpack.c.l.b16 %v401
    %v441 = vunpack.c.l.b16 %v402
    %v442 = vunpack.c.l.b16 %v403
    %v443 = vunpack.c.l.b16 %v404
    %v444 = vunpack.c.l.b16 %v405
    %v445 = vunpack.c.l.b16 %v406
    %v446 = vunpack.c.l.b16 %v407
    %v447 = vunpack.c.l.b16 %v408
    %v448 = vunpack.c.l.b16 %v409
    %v449 = vunpack.c.l.b16 %v410
    %v450 = vunpack.c.l.b16 %v411
    %v451 = vunpack.c.l.b16 %v412
    %v452 = vpack.c.b16 %v437, %v436
    %v453 = vpack.c.b16 %v439, %v438
    %v454 = vpack.c.b16 %v441, %v440
    %v455 = vpack.c.b16 %v443, %v442
    %v456 = vpack.c.b16 %v445, %v444
    %v457 = vpack.c.b16 %v447, %v446
    %v458 = vpack.c.b16 %v449, %v448
    %v459 = vpack.c.b16 %v451, %v450
    %468 = vmatprep.subr.bf16.mxu0 0
    %469 = vmatpush1.bf16.msra.mxu0 %v452
    %470 = vmatprep.subr.bf16.mxu0 0
    %471 = vmatpush1.bf16.msra.mxu0 %v453
    %472 = vmatprep.subr.bf16.mxu0 0
    %473 = vmatpush1.bf16.msra.mxu0 %v454
    %474 = vmatprep.subr.bf16.mxu0 0
    %475 = vmatpush1.bf16.msra.mxu0 %v455
    %476 = vmatprep.subr.bf16.mxu0 0
    %477 = vmatpush1.bf16.msra.mxu0 %v456
    %478 = vmatprep.subr.bf16.mxu0 0
    %479 = vmatpush1.bf16.msra.mxu0 %v457
    %480 = vmatprep.subr.bf16.mxu0 0
    %481 = vmatpush1.bf16.msra.mxu0 %v458
    %482 = vmatprep.subr.bf16.mxu0 0
    %483 = vmatpush1.bf16.msra.mxu0 %v459
    %484 = vmatprep.subr.bf16.mxu0 0
    %485 = vmatpush1.bf16.msra.mxu0 0
    %486 = vmatprep.subr.bf16.mxu0 0
    %487 = vmatpush1.bf16.msra.mxu0 0
    %488 = vmatprep.subr.bf16.mxu0 0
    %489 = vmatpush1.bf16.msra.mxu0 0
    %490 = vmatprep.subr.bf16.mxu0 0
    %491 = vmatpush1.bf16.msra.mxu0 0
    %492 = vmatprep.subr.bf16.mxu0 0
    %493 = vmatpush1.bf16.msra.mxu0 0
    %494 = vmatprep.subr.bf16.mxu0 0
    %495 = vmatpush1.bf16.msra.mxu0 0
    %496 = vmatprep.subr.bf16.mxu0 0
    %497 = vmatpush1.bf16.msra.mxu0 0
    %498 = vmatprep.subr.bf16.mxu0 0
    %499 = vmatpush1.bf16.msra.mxu0 0
    %500 = vmatprep.mubr.bf16.mxu0 0
    %501 = vmatmul.mubr.bf16.gmra.mrb[0].mxu0 %v396
    %v502 = vpop.f32.mrb[0].mxu0
    %v503 = vadd.f32 %v418, %v502
    %v504 = vpop.f32.mrb[0].mxu0
    %v505 = vpop.f32.mrb[0].mxu0
    %v506 = vpop.f32.mrb[0].mxu0
    %507 = vdwg.mxu0
    %508 = vst.msk [vmem:[#allocation12] sm:$0xff] %vm171, %v503
    %v509 = vld [vmem:[%s4] sm:$0xf]
    %v510 = vld [vmem:[%s4 + $0x4] sm:$0xf]
    %v511 = vld [vmem:[%s4 + $0x8] sm:$0xf]
    %v512 = vld [vmem:[%s4 + $0xc] sm:$0xf]
    %v513 = vld [vmem:[%s4 + $0x10] sm:$0xf]
    %v514 = vld [vmem:[%s4 + $0x14] sm:$0xf]
    %v515 = vld [vmem:[%s4 + $0x18] sm:$0xf]
    %v516 = vld [vmem:[%s4 + $0x1c] sm:$0xf]
    %v517 = vld [vmem:[#allocation8] sm:$0x1]
    %v519 = vlaneseq
    %v520 = vshrl.u32 %v519, 7
    %v521 = vsub.s32 0, %v520
    %v522 = vrot.slane %v517, %v521
    %v532 = vunpack.c.l.b16 %v509
    %v533 = vunpack.c.l.b16 %v510
    %v534 = vunpack.c.l.b16 %v511
    %v535 = vunpack.c.l.b16 %v512
    %v536 = vunpack.c.l.b16 %v513
    %v537 = vunpack.c.l.b16 %v514
    %v538 = vunpack.c.l.b16 %v515
    %v539 = vunpack.c.l.b16 %v516
    %v540 = vpack.c.b16 %v533, %v532
    %v541 = vpack.c.b16 %v535, %v534
    %v542 = vpack.c.b16 %v537, %v536
    %v543 = vpack.c.b16 %v539, %v538
    %548 = vmatprep.subr.bf16.mxu0 0
    %549 = vmatpush1.bf16.msra.mxu0 %v540
    %550 = vmatprep.subr.bf16.mxu0 0
    %551 = vmatpush1.bf16.msra.mxu0 %v541
    %552 = vmatprep.subr.bf16.mxu0 0
    %553 = vmatpush1.bf16.msra.mxu0 %v542
    %554 = vmatprep.subr.bf16.mxu0 0
    %555 = vmatpush1.bf16.msra.mxu0 %v543
    %556 = vmatprep.subr.bf16.mxu0 0
    %557 = vmatpush1.bf16.msra.mxu0 0
    %558 = vmatprep.subr.bf16.mxu0 0
    %559 = vmatpush1.bf16.msra.mxu0 0
    %560 = vmatprep.subr.bf16.mxu0 0
    %561 = vmatpush1.bf16.msra.mxu0 0
    %562 = vmatprep.subr.bf16.mxu0 0
    %563 = vmatpush1.bf16.msra.mxu0 0
    %564 = vmatprep.subr.bf16.mxu0 0
    %565 = vmatpush1.bf16.msra.mxu0 0
    %566 = vmatprep.subr.bf16.mxu0 0
    %567 = vmatpush1.bf16.msra.mxu0 0
    %568 = vmatprep.subr.bf16.mxu0 0
    %569 = vmatpush1.bf16.msra.mxu0 0
    %570 = vmatprep.subr.bf16.mxu0 0
    %571 = vmatpush1.bf16.msra.mxu0 0
    %572 = vmatprep.subr.bf16.mxu0 0
    %573 = vmatpush1.bf16.msra.mxu0 0
    %574 = vmatprep.subr.bf16.mxu0 0
    %575 = vmatpush1.bf16.msra.mxu0 0
    %576 = vmatprep.subr.bf16.mxu0 0
    %577 = vmatpush1.bf16.msra.mxu0 0
    %578 = vmatprep.subr.bf16.mxu0 0
    %579 = vmatpush1.bf16.msra.mxu0 0
    %580 = vmatprep.mubr.bf16.mxu0 0
    %581 = vmatmul.mubr.bf16.gmra.mrb[0].mxu0 %v173
    %v582 = vpop.f32.mrb[0].mxu0
    %v583 = vadd.f32 %v522, %v582
    %v584 = vpop.f32.mrb[0].mxu0
    %v585 = vpop.f32.mrb[0].mxu0
    %v586 = vpop.f32.mrb[0].mxu0
    %587 = vdwg.mxu0
    %v588 = vmax.f32 %v583, 0.0
    %v589 = vld [vmem:[%s10] sm:$0x1]
    %v591 = vlaneseq
    %v592 = vshrl.u32 %v591, 7
    %v593 = vsub.s32 0, %v592
    %v594 = vrot.slane %v589, %v593
    %v596 = vmul.f32 %v588, %v594
    %597 = vadd.xlane.f32.xlu0 %v596
    %v598 = vpop.xlane.xlu0 %597
    %v599 = vld [vmem:[#allocation2] sm:$0x1]
    %v601 = vlaneseq
    %v602 = vshrl.u32 %v601, 7
    %v603 = vsub.s32 0, %v602
    %v604 = vrot.slane %v599, %v603
    %v606 = vadd.f32 %v598, %v604
    %v607 = vxor.u32 %v606, 2147483648
    %v608 = vmul.f32 %v607, 1.442695
    %v609 = vpow.pop %v608
    %v610 = vadd.f32 %v609, 1.0
    %v611 = vrcp.pop %v610
    %v612 = vmul.f32 1.0, %v611
    %vm613 = vcmask 7168
    %614 = vst.msk [vmem:[%s13] sm:$0xff] %vm613, %v612
    // Predicated region
    $region70: #{net_forward.1} parent=1 // pred_check
      _
    $region71: #{net_forward.1} parent=1 // pred_check_branch
      %616 = sbr.rel (0) target = $region73
    $region72: #{net_forward.1} parent=1 // pred_region
      %s618 = ssub.s32 128, 128
      %619 = vsyncadd [#allocation5], %s618
      %s621 = sshll.u32 [#allocation12], 4
      %s622 = int_to_ptr.vmem [resolvable:$true] %s621
      %624 = dma.vmem_to_hbm [thread:$0]  %s622, 128, %s12, [#allocation5]
    $region73: #{net_forward.1} parent=1 // pred_fallthru
      _
    // Predicated region
    $region74: #{net_forward.1} parent=1 // pred_check
      _
    $region75: #{net_forward.1} parent=1 // pred_check_branch
      %626 = sbr.rel (0) target = $region77
    $region76: #{net_forward.1} parent=1 // pred_region
      _
    $region77: #{net_forward.1} parent=1 // pred_fallthru
      _
    // Predicated region
    $region78: #{net_forward.1} parent=1 // pred_check
      _
    $region79: #{net_forward.1} parent=1 // pred_check_branch
      %628 = sbr.rel (0) target = $region81
    $region80: #{net_forward.1} parent=1 // pred_region
      %629 = dma.done [#allocation5], 128
    $region81: #{net_forward.1} parent=1 // pred_fallthru
      _
    // Predicated region
    $region82: #{net_forward.1} parent=1 // pred_check
      _
    $region83: #{net_forward.1} parent=1 // pred_check_branch
      %631 = sbr.rel (0) target = $region85
    $region84: #{net_forward.1} parent=1 // pred_region
      _
    $region85: #{net_forward.1} parent=1 // pred_fallthru
      _
    %632 = vsyncpa [#allocation4], 1
    %633 = vsyncpa [#allocation7], 1
    %634 = vsyncpa [#allocation10], 1
    %635 = vsyncpa [#allocation5], 1

</llo_original>
